<compile_context>
chip_gen: v6e
topology: v6e:2x2x1
jax: 0.10.0
libtpu: 0.0.40
codegen_flags: <defaults>
</compile_context>

<pallas_src>
import functools

import jax
import jax.numpy as jnp
import numpy as np
from jax.experimental import pallas as pl
from jax.experimental.pallas import tpu as pltpu


def _seq_summary_kernel(cls_ref, hs_flat_hbm, w_ref, b_ref, out_ref,
                        x_buf, sems, *, Bt, B, S, use_tanh):
    """One grid step = one tile of Bt batch rows.

    cls_ref     : SMEM, (B,) int32          -- scalar-prefetched cls positions
    hs_flat_hbm : HBM (pl.ANY), (B*S, H)    -- hidden states, flattened (b, s) -> row
    w_ref       : VMEM, (H, C)              -- projection weight (resident)
    b_ref       : VMEM, (1, C)              -- projection bias   (resident)
    out_ref     : VMEM, (Bt, C)             -- this tile's output block
    x_buf       : VMEM scratch, (Bt, H)     -- gathered cls rows
    sems        : DMA semaphores, (Bt,)
    """
    t = pl.program_id(0)
    base = t * Bt

    # Issue Bt tiny row-gather DMAs: hidden_states[b, cls[b], :] -> x_buf[j, :].
    # Batch index is clamped so padded tail rows just duplicate the last valid
    # row (their outputs are sliced away in the wrapper).
    copies = []
    for j in range(Bt):  # static unroll
        b = jnp.minimum(base + j, B - 1)
        row = b * S + cls_ref[b]                      # flat (b, s) row index
        cp = pltpu.make_async_copy(
            hs_flat_hbm.at[pl.ds(row, 1), :],         # (1, H) contiguous in HBM
            x_buf.at[pl.ds(j, 1), :],                 # (1, H) in VMEM scratch
            sems.at[j],
        )
        cp.start()
        copies.append(cp)
    for cp in copies:
        cp.wait()

    # Batched projection on the MXU, bias add (+ optional tanh on the EUP).
    y = jnp.dot(x_buf[...], w_ref[...], preferred_element_type=jnp.float32)
    y = y + b_ref[...]
    if use_tanh:
        y = jnp.tanh(y)
    # first_dropout / last_dropout: Identity at inference time.
    out_ref[...] = y.astype(out_ref.dtype)


def sequence_summary(hidden_states, weight, bias, cls_index=None, use_tanh=False):
    """hidden_states: [B, S, H], weight: [H, C], bias: [C], cls_index: [B] int32."""
    B, S, H = hidden_states.shape
    C = weight.shape[1]

    if cls_index is None:
        # summary_type == 'cls_index' with cls_index None -> take the last token.
        cls_index = jnp.full((B,), S - 1, dtype=jnp.int32)
    # Clamp to valid range (matches gather semantics; avoids OOB DMAs).
    cls_index = jnp.clip(cls_index.astype(jnp.int32), 0, S - 1)

    # Batch tile: at least 8 sublanes, at most 128 rows per MXU pass.
    Bt = min(128, max(8, B))
    Bt = ((Bt + 7) // 8) * 8
    B_pad = ((B + Bt - 1) // Bt) * Bt
    num_tiles = B_pad // Bt

    hs_flat = hidden_states.reshape(B * S, H)   # contiguous, free reshape
    bias2d = bias.reshape(1, C)

    kernel = functools.partial(_seq_summary_kernel, Bt=Bt, B=B, S=S,
                               use_tanh=use_tanh)

    grid_spec = pltpu.PrefetchScalarGridSpec(
        num_scalar_prefetch=1,                          # cls_index -> SMEM
        grid=(num_tiles,),
        in_specs=[
            pl.BlockSpec(memory_space=pl.ANY),          # hidden_states stay in HBM
            pl.BlockSpec((H, C), lambda t, cls: (0, 0)),    # weight (resident)
            pl.BlockSpec((1, C), lambda t, cls: (0, 0)),    # bias   (resident)
        ],
        out_specs=pl.BlockSpec((Bt, C), lambda t, cls: (t, 0)),  # per-step block
        scratch_shapes=[
            pltpu.VMEM((Bt, H), hidden_states.dtype),   # gathered cls rows
            pltpu.SemaphoreType.DMA((Bt,)),
        ],
    )

    out_padded = pl.pallas_call(
        kernel,
        grid_spec=grid_spec,
        out_shape=jax.ShapeDtypeStruct((B_pad, C), hidden_states.dtype),
        compiler_params=pltpu.CompilerParams(
            dimension_semantics=("parallel",),          # independent batch tiles
        ),
    )(cls_index, hs_flat, weight, bias2d)

    return out_padded[:B]


def sequence_summary_ref(hidden_states, weight, bias, cls_index, use_tanh=False):
    gathered = jnp.take_along_axis(
        hidden_states, cls_index[:, None, None], axis=1
    )[:, 0, :]
    y = gathered @ weight + bias
    if use_tanh:
        y = jnp.tanh(y)
    return y


if __name__ == "__main__":
    # Small shapes consistent with the module: [bsz, seq_len, hidden_size].
    B, S, H, C = 2, 8, 32, 8        # C = num_labels (summary_proj_to_labels)

    key = jax.random.PRNGKey(0)
    k_hs, k_w, k_b, k_idx = jax.random.split(key, 4)

    hidden_states = jax.random.normal(k_hs, (B, S, H), dtype=jnp.float32)
    # nn.Linear(hidden_size, num_labels) parameters, deterministic init.
    weight = jax.random.normal(k_w, (H, C), dtype=jnp.float32) * 0.02
    bias = jax.random.normal(k_b, (C,), dtype=jnp.float32) * 0.02
    cls_index = jax.random.randint(k_idx, (B,), 0, S, dtype=jnp.int32)

    out = jax.block_until_ready(sequence_summary(hidden_states, weight, bias, cls_index))
    ref = sequence_summary_ref(hidden_states, weight, bias, cls_index)
    np.testing.assert_allclose(np.asarray(out), np.asarray(ref), rtol=1e-5, atol=1e-5)

    # Default path: cls_index=None -> last token.
    out_last = jax.block_until_ready(sequence_summary(hidden_states, weight, bias, None))
    ref_last = sequence_summary_ref(
        hidden_states, weight, bias, jnp.full((B,), S - 1, dtype=jnp.int32)
    )
    np.testing.assert_allclose(np.asarray(out_last), np.asarray(ref_last),
                               rtol=1e-5, atol=1e-5)

    # Optional tanh activation path (summary_activation == 'tanh').
    out_t = jax.block_until_ready(
        sequence_summary(hidden_states, weight, bias, cls_index, use_tanh=True))
    ref_t = sequence_summary_ref(hidden_states, weight, bias, cls_index, use_tanh=True)
    np.testing.assert_allclose(np.asarray(out_t), np.asarray(ref_t), rtol=1e-5, atol=1e-5)

    # TODO(synk): summary_first_dropout / summary_last_dropout are identity in
    # eval mode; training-mode stochastic dropout not implemented.
    print("KERNEL_OK")
</pallas_src>

<mosaic_0001>
module attributes {stable_mosaic.version = 11 : i64} {
  func.func @_seq_summary_kernel(%arg0: i32, %arg1: memref<2xi32, #tpu.memory_space<smem>>, %arg2: memref<16x32xf32, #tpu.memory_space<any>>, %arg3: memref<32x8xf32, #tpu.memory_space<vmem>>, %arg4: memref<1x8xf32, #tpu.memory_space<vmem>>, %arg5: memref<8x8xf32, #tpu.memory_space<vmem>>, %arg6: memref<8x32xf32, #tpu.memory_space<vmem>>, %arg7: memref<8x!tpu.dma_semaphore, #tpu.memory_space<semaphore_mem>>) attributes {dimension_semantics = [#tpu.dimension_semantics<parallel>], iteration_bounds = array<i64: 1>, scalar_prefetch = 1 : i64, scratch_operands = 2 : i64, tpu.core_type = #tpu.core_type<tc>, window_params = [{}, {pipeline_mode = #tpu.pipeline_mode<synchronous>, transform_indices = @transform_1, window_bounds = array<i64: 32, 8>}, {pipeline_mode = #tpu.pipeline_mode<synchronous>, transform_indices = @transform_2, window_bounds = array<i64: 1, 8>}, {transform_indices = @transform_3, window_bounds = array<i64: 8, 8>}]} {
    %c8_i32 = arith.constant 8 : i32
    %0 = arith.muli %arg0, %c8_i32 : i32
    %c0_i32 = arith.constant 0 : i32
    %1 = arith.addi %0, %c0_i32 : i32
    %c1_i32 = arith.constant 1 : i32
    %2 = arith.minsi %1, %c1_i32 : i32
    %c8_i32_0 = arith.constant 8 : i32
    %3 = arith.muli %2, %c8_i32_0 : i32
    %4 = arith.index_cast %2 : i32 to index
    %5 = memref.load %arg1[%4] : memref<2xi32, #tpu.memory_space<smem>>
    %6 = arith.addi %3, %5 : i32
    %c0_i32_1 = arith.constant 0 : i32
    %c0_i32_2 = arith.constant 0 : i32
    %7 = tpu.memref_slice %arg2[%6, %c0_i32_2] : memref<16x32xf32, #tpu.memory_space<any>> -> memref<1x32xf32, #tpu.memory_space<any>>
    %c0_i32_3 = arith.constant 0 : i32
    %c0_i32_4 = arith.constant 0 : i32
    %8 = tpu.memref_slice %arg6[%c0_i32_3, %c0_i32_4] : memref<8x32xf32, #tpu.memory_space<vmem>> -> memref<1x32xf32, #tpu.memory_space<vmem>>
    %9 = tpu.memref_slice %arg7[%c0_i32_1] : memref<8x!tpu.dma_semaphore, #tpu.memory_space<semaphore_mem>> -> memref<1x!tpu.dma_semaphore, #tpu.memory_space<semaphore_mem>>
    %10 = tpu.memref_squeeze %9 : memref<1x!tpu.dma_semaphore, #tpu.memory_space<semaphore_mem>> -> memref<!tpu.dma_semaphore, #tpu.memory_space<semaphore_mem>>
    tpu.enqueue_dma source(%7 : memref<1x32xf32, #tpu.memory_space<any>>) target(%8 : memref<1x32xf32, #tpu.memory_space<vmem>>) target_semaphore(%10 : memref<!tpu.dma_semaphore, #tpu.memory_space<semaphore_mem>>)
    %c1_i32_5 = arith.constant 1 : i32
    %11 = arith.addi %0, %c1_i32_5 : i32
    %c1_i32_6 = arith.constant 1 : i32
    %12 = arith.minsi %11, %c1_i32_6 : i32
    %c8_i32_7 = arith.constant 8 : i32
    %13 = arith.muli %12, %c8_i32_7 : i32
    %14 = arith.index_cast %12 : i32 to index
    %15 = memref.load %arg1[%14] : memref<2xi32, #tpu.memory_space<smem>>
    %16 = arith.addi %13, %15 : i32
    %c1_i32_8 = arith.constant 1 : i32
    %c0_i32_9 = arith.constant 0 : i32
    %17 = tpu.memref_slice %arg2[%16, %c0_i32_9] : memref<16x32xf32, #tpu.memory_space<any>> -> memref<1x32xf32, #tpu.memory_space<any>>
    %c1_i32_10 = arith.constant 1 : i32
    %c0_i32_11 = arith.constant 0 : i32
    %18 = tpu.memref_slice %arg6[%c1_i32_10, %c0_i32_11] : memref<8x32xf32, #tpu.memory_space<vmem>> -> memref<1x32xf32, #tpu.memory_space<vmem>>
    %19 = tpu.memref_slice %arg7[%c1_i32_8] : memref<8x!tpu.dma_semaphore, #tpu.memory_space<semaphore_mem>> -> memref<1x!tpu.dma_semaphore, #tpu.memory_space<semaphore_mem>>
    %20 = tpu.memref_squeeze %19 : memref<1x!tpu.dma_semaphore, #tpu.memory_space<semaphore_mem>> -> memref<!tpu.dma_semaphore, #tpu.memory_space<semaphore_mem>>
    tpu.enqueue_dma source(%17 : memref<1x32xf32, #tpu.memory_space<any>>) target(%18 : memref<1x32xf32, #tpu.memory_space<vmem>>) target_semaphore(%20 : memref<!tpu.dma_semaphore, #tpu.memory_space<semaphore_mem>>)
    %c2_i32 = arith.constant 2 : i32
    %21 = arith.addi %0, %c2_i32 : i32
    %c1_i32_12 = arith.constant 1 : i32
    %22 = arith.minsi %21, %c1_i32_12 : i32
    %c8_i32_13 = arith.constant 8 : i32
    %23 = arith.muli %22, %c8_i32_13 : i32
    %24 = arith.index_cast %22 : i32 to index
    %25 = memref.load %arg1[%24] : memref<2xi32, #tpu.memory_space<smem>>
    %26 = arith.addi %23, %25 : i32
    %c2_i32_14 = arith.constant 2 : i32
    %c0_i32_15 = arith.constant 0 : i32
    %27 = tpu.memref_slice %arg2[%26, %c0_i32_15] : memref<16x32xf32, #tpu.memory_space<any>> -> memref<1x32xf32, #tpu.memory_space<any>>
    %c2_i32_16 = arith.constant 2 : i32
    %c0_i32_17 = arith.constant 0 : i32
    %28 = tpu.memref_slice %arg6[%c2_i32_16, %c0_i32_17] : memref<8x32xf32, #tpu.memory_space<vmem>> -> memref<1x32xf32, #tpu.memory_space<vmem>>
    %29 = tpu.memref_slice %arg7[%c2_i32_14] : memref<8x!tpu.dma_semaphore, #tpu.memory_space<semaphore_mem>> -> memref<1x!tpu.dma_semaphore, #tpu.memory_space<semaphore_mem>>
    %30 = tpu.memref_squeeze %29 : memref<1x!tpu.dma_semaphore, #tpu.memory_space<semaphore_mem>> -> memref<!tpu.dma_semaphore, #tpu.memory_space<semaphore_mem>>
    tpu.enqueue_dma source(%27 : memref<1x32xf32, #tpu.memory_space<any>>) target(%28 : memref<1x32xf32, #tpu.memory_space<vmem>>) target_semaphore(%30 : memref<!tpu.dma_semaphore, #tpu.memory_space<semaphore_mem>>)
    %c3_i32 = arith.constant 3 : i32
    %31 = arith.addi %0, %c3_i32 : i32
    %c1_i32_18 = arith.constant 1 : i32
    %32 = arith.minsi %31, %c1_i32_18 : i32
    %c8_i32_19 = arith.constant 8 : i32
    %33 = arith.muli %32, %c8_i32_19 : i32
    %34 = arith.index_cast %32 : i32 to index
    %35 = memref.load %arg1[%34] : memref<2xi32, #tpu.memory_space<smem>>
    %36 = arith.addi %33, %35 : i32
    %c3_i32_20 = arith.constant 3 : i32
    %c0_i32_21 = arith.constant 0 : i32
    %37 = tpu.memref_slice %arg2[%36, %c0_i32_21] : memref<16x32xf32, #tpu.memory_space<any>> -> memref<1x32xf32, #tpu.memory_space<any>>
    %c3_i32_22 = arith.constant 3 : i32
    %c0_i32_23 = arith.constant 0 : i32
    %38 = tpu.memref_slice %arg6[%c3_i32_22, %c0_i32_23] : memref<8x32xf32, #tpu.memory_space<vmem>> -> memref<1x32xf32, #tpu.memory_space<vmem>>
    %39 = tpu.memref_slice %arg7[%c3_i32_20] : memref<8x!tpu.dma_semaphore, #tpu.memory_space<semaphore_mem>> -> memref<1x!tpu.dma_semaphore, #tpu.memory_space<semaphore_mem>>
    %40 = tpu.memref_squeeze %39 : memref<1x!tpu.dma_semaphore, #tpu.memory_space<semaphore_mem>> -> memref<!tpu.dma_semaphore, #tpu.memory_space<semaphore_mem>>
    tpu.enqueue_dma source(%37 : memref<1x32xf32, #tpu.memory_space<any>>) target(%38 : memref<1x32xf32, #tpu.memory_space<vmem>>) target_semaphore(%40 : memref<!tpu.dma_semaphore, #tpu.memory_space<semaphore_mem>>)
    %c4_i32 = arith.constant 4 : i32
    %41 = arith.addi %0, %c4_i32 : i32
    %c1_i32_24 = arith.constant 1 : i32
    %42 = arith.minsi %41, %c1_i32_24 : i32
    %c8_i32_25 = arith.constant 8 : i32
    %43 = arith.muli %42, %c8_i32_25 : i32
    %44 = arith.index_cast %42 : i32 to index
    %45 = memref.load %arg1[%44] : memref<2xi32, #tpu.memory_space<smem>>
    %46 = arith.addi %43, %45 : i32
    %c4_i32_26 = arith.constant 4 : i32
    %c0_i32_27 = arith.constant 0 : i32
    %47 = tpu.memref_slice %arg2[%46, %c0_i32_27] : memref<16x32xf32, #tpu.memory_space<any>> -> memref<1x32xf32, #tpu.memory_space<any>>
    %c4_i32_28 = arith.constant 4 : i32
    %c0_i32_29 = arith.constant 0 : i32
    %48 = tpu.memref_slice %arg6[%c4_i32_28, %c0_i32_29] : memref<8x32xf32, #tpu.memory_space<vmem>> -> memref<1x32xf32, #tpu.memory_space<vmem>>
    %49 = tpu.memref_slice %arg7[%c4_i32_26] : memref<8x!tpu.dma_semaphore, #tpu.memory_space<semaphore_mem>> -> memref<1x!tpu.dma_semaphore, #tpu.memory_space<semaphore_mem>>
    %50 = tpu.memref_squeeze %49 : memref<1x!tpu.dma_semaphore, #tpu.memory_space<semaphore_mem>> -> memref<!tpu.dma_semaphore, #tpu.memory_space<semaphore_mem>>
    tpu.enqueue_dma source(%47 : memref<1x32xf32, #tpu.memory_space<any>>) target(%48 : memref<1x32xf32, #tpu.memory_space<vmem>>) target_semaphore(%50 : memref<!tpu.dma_semaphore, #tpu.memory_space<semaphore_mem>>)
    %c5_i32 = arith.constant 5 : i32
    %51 = arith.addi %0, %c5_i32 : i32
    %c1_i32_30 = arith.constant 1 : i32
    %52 = arith.minsi %51, %c1_i32_30 : i32
    %c8_i32_31 = arith.constant 8 : i32
    %53 = arith.muli %52, %c8_i32_31 : i32
    %54 = arith.index_cast %52 : i32 to index
    %55 = memref.load %arg1[%54] : memref<2xi32, #tpu.memory_space<smem>>
    %56 = arith.addi %53, %55 : i32
    %c5_i32_32 = arith.constant 5 : i32
    %c0_i32_33 = arith.constant 0 : i32
    %57 = tpu.memref_slice %arg2[%56, %c0_i32_33] : memref<16x32xf32, #tpu.memory_space<any>> -> memref<1x32xf32, #tpu.memory_space<any>>
    %c5_i32_34 = arith.constant 5 : i32
    %c0_i32_35 = arith.constant 0 : i32
    %58 = tpu.memref_slice %arg6[%c5_i32_34, %c0_i32_35] : memref<8x32xf32, #tpu.memory_space<vmem>> -> memref<1x32xf32, #tpu.memory_space<vmem>>
    %59 = tpu.memref_slice %arg7[%c5_i32_32] : memref<8x!tpu.dma_semaphore, #tpu.memory_space<semaphore_mem>> -> memref<1x!tpu.dma_semaphore, #tpu.memory_space<semaphore_mem>>
    %60 = tpu.memref_squeeze %59 : memref<1x!tpu.dma_semaphore, #tpu.memory_space<semaphore_mem>> -> memref<!tpu.dma_semaphore, #tpu.memory_space<semaphore_mem>>
    tpu.enqueue_dma source(%57 : memref<1x32xf32, #tpu.memory_space<any>>) target(%58 : memref<1x32xf32, #tpu.memory_space<vmem>>) target_semaphore(%60 : memref<!tpu.dma_semaphore, #tpu.memory_space<semaphore_mem>>)
    %c6_i32 = arith.constant 6 : i32
    %61 = arith.addi %0, %c6_i32 : i32
    %c1_i32_36 = arith.constant 1 : i32
    %62 = arith.minsi %61, %c1_i32_36 : i32
    %c8_i32_37 = arith.constant 8 : i32
    %63 = arith.muli %62, %c8_i32_37 : i32
    %64 = arith.index_cast %62 : i32 to index
    %65 = memref.load %arg1[%64] : memref<2xi32, #tpu.memory_space<smem>>
    %66 = arith.addi %63, %65 : i32
    %c6_i32_38 = arith.constant 6 : i32
    %c0_i32_39 = arith.constant 0 : i32
    %67 = tpu.memref_slice %arg2[%66, %c0_i32_39] : memref<16x32xf32, #tpu.memory_space<any>> -> memref<1x32xf32, #tpu.memory_space<any>>
    %c6_i32_40 = arith.constant 6 : i32
    %c0_i32_41 = arith.constant 0 : i32
    %68 = tpu.memref_slice %arg6[%c6_i32_40, %c0_i32_41] : memref<8x32xf32, #tpu.memory_space<vmem>> -> memref<1x32xf32, #tpu.memory_space<vmem>>
    %69 = tpu.memref_slice %arg7[%c6_i32_38] : memref<8x!tpu.dma_semaphore, #tpu.memory_space<semaphore_mem>> -> memref<1x!tpu.dma_semaphore, #tpu.memory_space<semaphore_mem>>
    %70 = tpu.memref_squeeze %69 : memref<1x!tpu.dma_semaphore, #tpu.memory_space<semaphore_mem>> -> memref<!tpu.dma_semaphore, #tpu.memory_space<semaphore_mem>>
    tpu.enqueue_dma source(%67 : memref<1x32xf32, #tpu.memory_space<any>>) target(%68 : memref<1x32xf32, #tpu.memory_space<vmem>>) target_semaphore(%70 : memref<!tpu.dma_semaphore, #tpu.memory_space<semaphore_mem>>)
    %c7_i32 = arith.constant 7 : i32
    %71 = arith.addi %0, %c7_i32 : i32
    %c1_i32_42 = arith.constant 1 : i32
    %72 = arith.minsi %71, %c1_i32_42 : i32
    %c8_i32_43 = arith.constant 8 : i32
    %73 = arith.muli %72, %c8_i32_43 : i32
    %74 = arith.index_cast %72 : i32 to index
    %75 = memref.load %arg1[%74] : memref<2xi32, #tpu.memory_space<smem>>
    %76 = arith.addi %73, %75 : i32
    %c7_i32_44 = arith.constant 7 : i32
    %c0_i32_45 = arith.constant 0 : i32
    %77 = tpu.memref_slice %arg2[%76, %c0_i32_45] : memref<16x32xf32, #tpu.memory_space<any>> -> memref<1x32xf32, #tpu.memory_space<any>>
    %c7_i32_46 = arith.constant 7 : i32
    %c0_i32_47 = arith.constant 0 : i32
    %78 = tpu.memref_slice %arg6[%c7_i32_46, %c0_i32_47] : memref<8x32xf32, #tpu.memory_space<vmem>> -> memref<1x32xf32, #tpu.memory_space<vmem>>
    %79 = tpu.memref_slice %arg7[%c7_i32_44] : memref<8x!tpu.dma_semaphore, #tpu.memory_space<semaphore_mem>> -> memref<1x!tpu.dma_semaphore, #tpu.memory_space<semaphore_mem>>
    %80 = tpu.memref_squeeze %79 : memref<1x!tpu.dma_semaphore, #tpu.memory_space<semaphore_mem>> -> memref<!tpu.dma_semaphore, #tpu.memory_space<semaphore_mem>>
    tpu.enqueue_dma source(%77 : memref<1x32xf32, #tpu.memory_space<any>>) target(%78 : memref<1x32xf32, #tpu.memory_space<vmem>>) target_semaphore(%80 : memref<!tpu.dma_semaphore, #tpu.memory_space<semaphore_mem>>)
    %c0_i32_48 = arith.constant 0 : i32
    %c0_i32_49 = arith.constant 0 : i32
    %81 = tpu.memref_slice %arg2[%6, %c0_i32_49] : memref<16x32xf32, #tpu.memory_space<any>> -> memref<1x32xf32, #tpu.memory_space<any>>
    %c0_i32_50 = arith.constant 0 : i32
    %c0_i32_51 = arith.constant 0 : i32
    %82 = tpu.memref_slice %arg6[%c0_i32_50, %c0_i32_51] : memref<8x32xf32, #tpu.memory_space<vmem>> -> memref<1x32xf32, #tpu.memory_space<vmem>>
    %83 = tpu.memref_slice %arg7[%c0_i32_48] : memref<8x!tpu.dma_semaphore, #tpu.memory_space<semaphore_mem>> -> memref<1x!tpu.dma_semaphore, #tpu.memory_space<semaphore_mem>>
    %84 = tpu.memref_squeeze %83 : memref<1x!tpu.dma_semaphore, #tpu.memory_space<semaphore_mem>> -> memref<!tpu.dma_semaphore, #tpu.memory_space<semaphore_mem>>
    tpu.wait_dma2 semaphore(%84 : memref<!tpu.dma_semaphore, #tpu.memory_space<semaphore_mem>>) src(%81 : memref<1x32xf32, #tpu.memory_space<any>>) dst(%82 : memref<1x32xf32, #tpu.memory_space<vmem>>)
    %c1_i32_52 = arith.constant 1 : i32
    %c0_i32_53 = arith.constant 0 : i32
    %85 = tpu.memref_slice %arg2[%16, %c0_i32_53] : memref<16x32xf32, #tpu.memory_space<any>> -> memref<1x32xf32, #tpu.memory_space<any>>
    %c1_i32_54 = arith.constant 1 : i32
    %c0_i32_55 = arith.constant 0 : i32
    %86 = tpu.memref_slice %arg6[%c1_i32_54, %c0_i32_55] : memref<8x32xf32, #tpu.memory_space<vmem>> -> memref<1x32xf32, #tpu.memory_space<vmem>>
    %87 = tpu.memref_slice %arg7[%c1_i32_52] : memref<8x!tpu.dma_semaphore, #tpu.memory_space<semaphore_mem>> -> memref<1x!tpu.dma_semaphore, #tpu.memory_space<semaphore_mem>>
    %88 = tpu.memref_squeeze %87 : memref<1x!tpu.dma_semaphore, #tpu.memory_space<semaphore_mem>> -> memref<!tpu.dma_semaphore, #tpu.memory_space<semaphore_mem>>
    tpu.wait_dma2 semaphore(%88 : memref<!tpu.dma_semaphore, #tpu.memory_space<semaphore_mem>>) src(%85 : memref<1x32xf32, #tpu.memory_space<any>>) dst(%86 : memref<1x32xf32, #tpu.memory_space<vmem>>)
    %c2_i32_56 = arith.constant 2 : i32
    %c0_i32_57 = arith.constant 0 : i32
    %89 = tpu.memref_slice %arg2[%26, %c0_i32_57] : memref<16x32xf32, #tpu.memory_space<any>> -> memref<1x32xf32, #tpu.memory_space<any>>
    %c2_i32_58 = arith.constant 2 : i32
    %c0_i32_59 = arith.constant 0 : i32
    %90 = tpu.memref_slice %arg6[%c2_i32_58, %c0_i32_59] : memref<8x32xf32, #tpu.memory_space<vmem>> -> memref<1x32xf32, #tpu.memory_space<vmem>>
    %91 = tpu.memref_slice %arg7[%c2_i32_56] : memref<8x!tpu.dma_semaphore, #tpu.memory_space<semaphore_mem>> -> memref<1x!tpu.dma_semaphore, #tpu.memory_space<semaphore_mem>>
    %92 = tpu.memref_squeeze %91 : memref<1x!tpu.dma_semaphore, #tpu.memory_space<semaphore_mem>> -> memref<!tpu.dma_semaphore, #tpu.memory_space<semaphore_mem>>
    tpu.wait_dma2 semaphore(%92 : memref<!tpu.dma_semaphore, #tpu.memory_space<semaphore_mem>>) src(%89 : memref<1x32xf32, #tpu.memory_space<any>>) dst(%90 : memref<1x32xf32, #tpu.memory_space<vmem>>)
    %c3_i32_60 = arith.constant 3 : i32
    %c0_i32_61 = arith.constant 0 : i32
    %93 = tpu.memref_slice %arg2[%36, %c0_i32_61] : memref<16x32xf32, #tpu.memory_space<any>> -> memref<1x32xf32, #tpu.memory_space<any>>
    %c3_i32_62 = arith.constant 3 : i32
    %c0_i32_63 = arith.constant 0 : i32
    %94 = tpu.memref_slice %arg6[%c3_i32_62, %c0_i32_63] : memref<8x32xf32, #tpu.memory_space<vmem>> -> memref<1x32xf32, #tpu.memory_space<vmem>>
    %95 = tpu.memref_slice %arg7[%c3_i32_60] : memref<8x!tpu.dma_semaphore, #tpu.memory_space<semaphore_mem>> -> memref<1x!tpu.dma_semaphore, #tpu.memory_space<semaphore_mem>>
    %96 = tpu.memref_squeeze %95 : memref<1x!tpu.dma_semaphore, #tpu.memory_space<semaphore_mem>> -> memref<!tpu.dma_semaphore, #tpu.memory_space<semaphore_mem>>
    tpu.wait_dma2 semaphore(%96 : memref<!tpu.dma_semaphore, #tpu.memory_space<semaphore_mem>>) src(%93 : memref<1x32xf32, #tpu.memory_space<any>>) dst(%94 : memref<1x32xf32, #tpu.memory_space<vmem>>)
    %c4_i32_64 = arith.constant 4 : i32
    %c0_i32_65 = arith.constant 0 : i32
    %97 = tpu.memref_slice %arg2[%46, %c0_i32_65] : memref<16x32xf32, #tpu.memory_space<any>> -> memref<1x32xf32, #tpu.memory_space<any>>
    %c4_i32_66 = arith.constant 4 : i32
    %c0_i32_67 = arith.constant 0 : i32
    %98 = tpu.memref_slice %arg6[%c4_i32_66, %c0_i32_67] : memref<8x32xf32, #tpu.memory_space<vmem>> -> memref<1x32xf32, #tpu.memory_space<vmem>>
    %99 = tpu.memref_slice %arg7[%c4_i32_64] : memref<8x!tpu.dma_semaphore, #tpu.memory_space<semaphore_mem>> -> memref<1x!tpu.dma_semaphore, #tpu.memory_space<semaphore_mem>>
    %100 = tpu.memref_squeeze %99 : memref<1x!tpu.dma_semaphore, #tpu.memory_space<semaphore_mem>> -> memref<!tpu.dma_semaphore, #tpu.memory_space<semaphore_mem>>
    tpu.wait_dma2 semaphore(%100 : memref<!tpu.dma_semaphore, #tpu.memory_space<semaphore_mem>>) src(%97 : memref<1x32xf32, #tpu.memory_space<any>>) dst(%98 : memref<1x32xf32, #tpu.memory_space<vmem>>)
    %c5_i32_68 = arith.constant 5 : i32
    %c0_i32_69 = arith.constant 0 : i32
    %101 = tpu.memref_slice %arg2[%56, %c0_i32_69] : memref<16x32xf32, #tpu.memory_space<any>> -> memref<1x32xf32, #tpu.memory_space<any>>
    %c5_i32_70 = arith.constant 5 : i32
    %c0_i32_71 = arith.constant 0 : i32
    %102 = tpu.memref_slice %arg6[%c5_i32_70, %c0_i32_71] : memref<8x32xf32, #tpu.memory_space<vmem>> -> memref<1x32xf32, #tpu.memory_space<vmem>>
    %103 = tpu.memref_slice %arg7[%c5_i32_68] : memref<8x!tpu.dma_semaphore, #tpu.memory_space<semaphore_mem>> -> memref<1x!tpu.dma_semaphore, #tpu.memory_space<semaphore_mem>>
    %104 = tpu.memref_squeeze %103 : memref<1x!tpu.dma_semaphore, #tpu.memory_space<semaphore_mem>> -> memref<!tpu.dma_semaphore, #tpu.memory_space<semaphore_mem>>
    tpu.wait_dma2 semaphore(%104 : memref<!tpu.dma_semaphore, #tpu.memory_space<semaphore_mem>>) src(%101 : memref<1x32xf32, #tpu.memory_space<any>>) dst(%102 : memref<1x32xf32, #tpu.memory_space<vmem>>)
    %c6_i32_72 = arith.constant 6 : i32
    %c0_i32_73 = arith.constant 0 : i32
    %105 = tpu.memref_slice %arg2[%66, %c0_i32_73] : memref<16x32xf32, #tpu.memory_space<any>> -> memref<1x32xf32, #tpu.memory_space<any>>
    %c6_i32_74 = arith.constant 6 : i32
    %c0_i32_75 = arith.constant 0 : i32
    %106 = tpu.memref_slice %arg6[%c6_i32_74, %c0_i32_75] : memref<8x32xf32, #tpu.memory_space<vmem>> -> memref<1x32xf32, #tpu.memory_space<vmem>>
    %107 = tpu.memref_slice %arg7[%c6_i32_72] : memref<8x!tpu.dma_semaphore, #tpu.memory_space<semaphore_mem>> -> memref<1x!tpu.dma_semaphore, #tpu.memory_space<semaphore_mem>>
    %108 = tpu.memref_squeeze %107 : memref<1x!tpu.dma_semaphore, #tpu.memory_space<semaphore_mem>> -> memref<!tpu.dma_semaphore, #tpu.memory_space<semaphore_mem>>
    tpu.wait_dma2 semaphore(%108 : memref<!tpu.dma_semaphore, #tpu.memory_space<semaphore_mem>>) src(%105 : memref<1x32xf32, #tpu.memory_space<any>>) dst(%106 : memref<1x32xf32, #tpu.memory_space<vmem>>)
    %c7_i32_76 = arith.constant 7 : i32
    %c0_i32_77 = arith.constant 0 : i32
    %109 = tpu.memref_slice %arg2[%76, %c0_i32_77] : memref<16x32xf32, #tpu.memory_space<any>> -> memref<1x32xf32, #tpu.memory_space<any>>
    %c7_i32_78 = arith.constant 7 : i32
    %c0_i32_79 = arith.constant 0 : i32
    %110 = tpu.memref_slice %arg6[%c7_i32_78, %c0_i32_79] : memref<8x32xf32, #tpu.memory_space<vmem>> -> memref<1x32xf32, #tpu.memory_space<vmem>>
    %111 = tpu.memref_slice %arg7[%c7_i32_76] : memref<8x!tpu.dma_semaphore, #tpu.memory_space<semaphore_mem>> -> memref<1x!tpu.dma_semaphore, #tpu.memory_space<semaphore_mem>>
    %112 = tpu.memref_squeeze %111 : memref<1x!tpu.dma_semaphore, #tpu.memory_space<semaphore_mem>> -> memref<!tpu.dma_semaphore, #tpu.memory_space<semaphore_mem>>
    tpu.wait_dma2 semaphore(%112 : memref<!tpu.dma_semaphore, #tpu.memory_space<semaphore_mem>>) src(%109 : memref<1x32xf32, #tpu.memory_space<any>>) dst(%110 : memref<1x32xf32, #tpu.memory_space<vmem>>)
    %c0 = arith.constant 0 : index
    %c0_80 = arith.constant 0 : index
    %113 = vector.load %arg6[%c0, %c0_80] : memref<8x32xf32, #tpu.memory_space<vmem>>, vector<8x32xf32>
    %c0_81 = arith.constant 0 : index
    %c0_82 = arith.constant 0 : index
    %114 = vector.load %arg3[%c0_81, %c0_82] : memref<32x8xf32, #tpu.memory_space<vmem>>, vector<32x8xf32>
    %cst = arith.constant dense<0.000000e+00> : vector<8x8xf32>
    %115 = tpu.matmul %113, %114, %cst {dimension_numbers = #tpu.dot_dimension_numbers<[1], [0], [0], [1], [0, 0, 1, 1], [], []>} : vector<8x32xf32>, vector<32x8xf32>, vector<8x8xf32> -> vector<8x8xf32>
    %c0_83 = arith.constant 0 : index
    %c0_84 = arith.constant 0 : index
    %116 = vector.load %arg4[%c0_83, %c0_84] : memref<1x8xf32, #tpu.memory_space<vmem>>, vector<1x8xf32>
    %117 = vector.broadcast %116 : vector<1x8xf32> to vector<8x8xf32>
    %118 = arith.addf %115, %117 : vector<8x8xf32>
    %c0_85 = arith.constant 0 : index
    %c0_86 = arith.constant 0 : index
    %119 = vector.load %arg5[%c0_85, %c0_86] : memref<8x8xf32, #tpu.memory_space<vmem>>, vector<8x8xf32>
    tpu.vector_store %arg5[%c0_85, %c0_86], %118 {strides = array<i32>} : memref<8x8xf32, #tpu.memory_space<vmem>>, vector<8x8xf32>,
    return
  }
  func.func @transform_1(%arg0: i32, %arg1: memref<2xi32, #tpu.memory_space<smem>>) -> (i32, i32) {
    %c0_i32 = arith.constant 0 : i32
    %c0_i32_0 = arith.constant 0 : i32
    %c0_i32_1 = arith.constant 0 : i32
    return %c0_i32, %c0_i32_0 : i32, i32
  }
  func.func @transform_2(%arg0: i32, %arg1: memref<2xi32, #tpu.memory_space<smem>>) -> (i32, i32) {
    %c0_i32 = arith.constant 0 : i32
    %c0_i32_0 = arith.constant 0 : i32
    %c0_i32_1 = arith.constant 0 : i32
    return %c0_i32, %c0_i32_0 : i32, i32
  }
  func.func @transform_3(%arg0: i32, %arg1: memref<2xi32, #tpu.memory_space<smem>>) -> (i32, i32) {
    %c0_i32 = arith.constant 0 : i32
    %c0_i32_0 = arith.constant 0 : i32
    return %arg0, %c0_i32 : i32, i32
  }
}

</mosaic_0001>

<llo_original>
// kernel: tpu_custom_call.1
$region0: #{tpu_custom_call.1}
  #allocation0 [shape = 'u32[]', space=smem, size = 0x4, offset = 0x4, fixed_abs, tag = 'smem constant byte address 0x4 - core index']
  #allocation1 [shape = 'u32[144,128]{1,0:T(1,128)}', space=vmem, size = 0x12000, scoped, tag = 'internal scratch']
  #allocation2 [shape = 'f32[8,32]{1,0:T(8,128)}', space=vmem, size = 0x1000, scoped, tag = 'scratch operand']
  #allocation3 [shape = 's32[8]{0}', space=sflag, size = 0x20, scoped, tag = 'scratch operand']
  #allocation4 [shape = 's32[1]{0}', space=sflag, size = 0x4, scoped, tag = 'scoped memory for tpu_custom_call.1']
  #allocation5 [shape = 'u8[512]{0}', space=smem, size = 0x200, scoped, tag = 'prefetched SMEM operand 0']
  #allocation8 [shape = 's32[]', space=sflag, size = 0x4, offset = 0, fixed_abs, tag = 'sflag constant byte address 0x0 - dummy sync flag']
  #allocation9 [shape = 's32[]', space=sflag, size = 0x4, offset = 0, fixed_abs, tag = 'sflag constant byte address 0x0 - dummy sync flag']
  #allocation10 [shape = 's32[]', space=sflag, size = 0x4, offset = 0, fixed_abs, tag = 'sflag constant byte address 0x0 - dummy sync flag']
  #allocation11 [shape = 's32[]', space=sflag, size = 0x4, offset = 0, fixed_abs, tag = 'sflag constant byte address 0x0 - dummy sync flag']
  #allocation12 [shape = 's32[]', space=sflag, size = 0x4, offset = 0, fixed_abs, tag = 'sflag constant byte address 0x0 - dummy sync flag']
  #allocation13 [shape = 's32[]', space=sflag, size = 0x4, offset = 0, fixed_abs, tag = 'sflag constant byte address 0x0 - dummy sync flag']
  #allocation14 [shape = 's32[]', space=sflag, size = 0x4, offset = 0, fixed_abs, tag = 'sflag constant byte address 0x0 - dummy sync flag']
  #allocation15 [shape = 's32[]', space=sflag, size = 0x4, offset = 0, fixed_abs, tag = 'sflag constant byte address 0x0 - dummy sync flag']
  %s0 = inlined_call_operand.vmem [shape: s32[2], index: 0, kind: input, shape index: {}]
  %s1 = inlined_call_operand.vmem [shape: f32[16,32], index: 1, kind: input, shape index: {}]
  %s2 = inlined_call_operand.vmem [shape: f32[32,8], index: 2, kind: input, shape index: {}]
  %s3 = inlined_call_operand.vmem [shape: f32[1,8], index: 3, kind: input, shape index: {}]
  %s4 = inlined_call_operand.hbm [shape: f32[8,8], index: 4, kind: output, shape index: {}]
  %s5 = sld [smem:[#allocation0]]
  $region258: #{tpu_custom_call.1} parent=0
    _
  %s7 = ssub.s32 1, %s5
  %s8 = scalar_select 0, %s7, %s5
  %s9 = sshll.u32 %s0, 4
  %s10 = int_to_ptr.vmem [resolvable:$true] %s9
  %12 = dma.vmem_to_smem %s10, 16, [#allocation5], [#allocation4]
  %13 = dma.done [#allocation4], 16
  %14 = sfence
  $region1: #{tpu_custom_call.1} parent=0
    #allocation6 [shape = 'u8[4096]{0}', space=vmem, size = 0x1000, scoped, tag = 'output window, operand 0, single buffered']
    #allocation7 [shape = 's32[1]{0}', space=sflag, size = 0x4, scoped, tag = 'scoped memory for tpu_custom_call.1']
    %15 = vsyncpa [#allocation7], 0
    // Predicated region
    $region2: #{tpu_custom_call.1} parent=1 // pred_check
      _
    $region3: #{tpu_custom_call.1} parent=1 // pred_check_branch
      %17 = sbr.rel (0) target = $region5
    $region4: #{tpu_custom_call.1} parent=1 // pred_region
      _
    $region5: #{tpu_custom_call.1} parent=1 // pred_fallthru
      _
    // Predicated region
    $region6: #{tpu_custom_call.1} parent=1 // pred_check
      _
    $region7: #{tpu_custom_call.1} parent=1 // pred_check_branch
      %19 = sbr.rel (0) target = $region9
    $region8: #{tpu_custom_call.1} parent=1 // pred_region
      _
    $region9: #{tpu_custom_call.1} parent=1 // pred_fallthru
      _
    %s20 = smul.u32 0, 8
    %p21 = scmp.lt.s32.totalorder %s20, 1
    %s22 = scalar_select %p21, %s20, 1
    %s23 = smul.u32 %s22, 8
    %s24 = sld [smem:[#allocation5 + %s22]]
    %s25 = sadd.s32 %s23, %s24
    %s26 = scalar_lea.vmem %s1, %s25
    %p28 = scmp.lt.u32.totalorder 1, 8
    %p29 = pneg %p28
    // Predicated region
    $region10: #{tpu_custom_call.1} parent=1 // pred_check
      _
    $region11: #{tpu_custom_call.1} parent=1 // pred_check_branch
      %31 = sbr.rel (%p28) target = $region13
    $region12: #{tpu_custom_call.1} parent=1 // pred_region
      %s47 = sand.u32 1, 7
      %p48 = scmp.eq.s32.totalorder %s47, 0
      %p49 = pneg %p48
      // Predicated region
      $region25: #{tpu_custom_call.1} parent=12 // pred_check
        _
      $region26: #{tpu_custom_call.1} parent=12 // pred_check_branch
        %51 = sbr.rel (%p48) target = $region28
      $region27: #{tpu_custom_call.1} parent=12 // pred_region
        %s52 = sand.u32 1, 7
        %s53 = ssub.s32 1, %s52
        %s54 = scalar_lea.vmem %s26, %s53
        %s55 = ssub.s32 1, %s52
        %s56 = scalar_lea.vmem [#allocation2], %s55
        %s57 = sshll.u32 1, %s52
        %s58 = ssub.s32 %s57, 1
        loop: start=0, step=1, limit=1
        $region29: #{tpu_custom_call.1} parent=27 // loop_pre_header
          _
        $region30: #{tpu_custom_call.1} parent=27 // loop_header
          %s60 = sphi 0, %s64
          %p61 = scmp.ge.s32.totalorder %s60, 1
          %s65 = sphi %s54, %s54
          %s66 = sphi %s56, %s56
        $region31: #{tpu_custom_call.1} parent=27 // loop_header_branch
          %63 = sbr.rel (%p61) target = $region35
        $region32: #{tpu_custom_call.1} parent=27 // loop_body
          %v67 = vld [vmem:[%s65] sm:%s58]
          %68 = vst [vmem:[%s66] sm:%s58] %v67
        $region33: #{tpu_custom_call.1} parent=27 // loop_footer
          %s64 = sadd.s32 1, %s60
        $region34: #{tpu_custom_call.1} parent=27 // loop_footer_branch
          %59 = sbr.rel target = $region30
        $region35: #{tpu_custom_call.1} parent=27 // loop_exit
          _
      $region28: #{tpu_custom_call.1} parent=12 // pred_fallthru
        _
    $region13: #{tpu_custom_call.1} parent=1 // pred_fallthru
      _
    // Predicated region
    $region14: #{tpu_custom_call.1} parent=1 // pred_check
      %p32 = pneg %p28
    $region15: #{tpu_custom_call.1} parent=1 // pred_check_branch
      %34 = sbr.rel (%p32) target = $region17
    $region16: #{tpu_custom_call.1} parent=1 // pred_region
      %s35 = sshll.u32 1, 1
      %s36 = ssub.s32 %s35, 1
      loop: start=0, step=1, limit=1
      $region18: #{tpu_custom_call.1} parent=16 // loop_pre_header
        _
      $region19: #{tpu_custom_call.1} parent=16 // loop_header
        %s38 = sphi 0, %s42
        %p39 = scmp.ge.s32.totalorder %s38, 1
        %s43 = sphi %s26, %s26
        %s44 = sphi [#allocation2], [#allocation2]
      $region20: #{tpu_custom_call.1} parent=16 // loop_header_branch
        %41 = sbr.rel (%p39) target = $region24
      $region21: #{tpu_custom_call.1} parent=16 // loop_body
        %v45 = vld [vmem:[%s43] sm:%s36]
        %46 = vst [vmem:[%s44] sm:%s36] %v45
      $region22: #{tpu_custom_call.1} parent=16 // loop_footer
        %s42 = sadd.s32 1, %s38
      $region23: #{tpu_custom_call.1} parent=16 // loop_footer_branch
        %37 = sbr.rel target = $region19
      $region24: #{tpu_custom_call.1} parent=16 // loop_exit
        _
    $region17: #{tpu_custom_call.1} parent=1 // pred_fallthru
      _
    // Predicated region
    $region36: #{tpu_custom_call.1} parent=1 // pred_check
      _
    $region37: #{tpu_custom_call.1} parent=1 // pred_check_branch
      %71 = sbr.rel (0) target = $region39
    $region38: #{tpu_custom_call.1} parent=1 // pred_region
      %72 = vsyncadd [#allocation3], 16
    $region39: #{tpu_custom_call.1} parent=1 // pred_fallthru
      _
    %s73 = sadd.s32 %s20, 1
    %p74 = scmp.lt.s32.totalorder %s73, 1
    %s75 = scalar_select %p74, %s73, 1
    %s76 = smul.u32 %s75, 8
    %s77 = sld [smem:[#allocation5 + %s75]]
    %s78 = sadd.s32 %s76, %s77
    %s79 = scalar_lea.vmem %s1, %s78
    %s80 = scalar_lea.vmem [#allocation2], 1
    %s81 = scalar_lea.sflag [#allocation3], 1
    %p83 = scmp.lt.u32.totalorder 1, 8
    %p84 = pneg %p83
    // Predicated region
    $region40: #{tpu_custom_call.1} parent=1 // pred_check
      _
    $region41: #{tpu_custom_call.1} parent=1 // pred_check_branch
      %86 = sbr.rel (%p83) target = $region43
    $region42: #{tpu_custom_call.1} parent=1 // pred_region
      %s102 = sand.u32 1, 7
      %p103 = scmp.eq.s32.totalorder %s102, 0
      %p104 = pneg %p103
      // Predicated region
      $region55: #{tpu_custom_call.1} parent=42 // pred_check
        _
      $region56: #{tpu_custom_call.1} parent=42 // pred_check_branch
        %106 = sbr.rel (%p103) target = $region58
      $region57: #{tpu_custom_call.1} parent=42 // pred_region
        %s107 = sand.u32 1, 7
        %s108 = ssub.s32 1, %s107
        %s109 = scalar_lea.vmem %s79, %s108
        %s110 = ssub.s32 1, %s107
        %s111 = scalar_lea.vmem %s80, %s110 [#allocation2]
        %s112 = sshll.u32 1, %s107
        %s113 = ssub.s32 %s112, 1
        loop: start=0, step=1, limit=1
        $region59: #{tpu_custom_call.1} parent=57 // loop_pre_header
          _
        $region60: #{tpu_custom_call.1} parent=57 // loop_header
          %s115 = sphi 0, %s119
          %p116 = scmp.ge.s32.totalorder %s115, 1
          %s120 = sphi %s109, %s109
          %s121 = sphi %s111, %s111
        $region61: #{tpu_custom_call.1} parent=57 // loop_header_branch
          %118 = sbr.rel (%p116) target = $region65
        $region62: #{tpu_custom_call.1} parent=57 // loop_body
          %v122 = vld [vmem:[%s120] sm:%s113]
          %123 = vst [vmem:[%s121] sm:%s113] %v122
        $region63: #{tpu_custom_call.1} parent=57 // loop_footer
          %s119 = sadd.s32 1, %s115
        $region64: #{tpu_custom_call.1} parent=57 // loop_footer_branch
          %114 = sbr.rel target = $region60
        $region65: #{tpu_custom_call.1} parent=57 // loop_exit
          _
      $region58: #{tpu_custom_call.1} parent=42 // pred_fallthru
        _
    $region43: #{tpu_custom_call.1} parent=1 // pred_fallthru
      _
    // Predicated region
    $region44: #{tpu_custom_call.1} parent=1 // pred_check
      %p87 = pneg %p83
    $region45: #{tpu_custom_call.1} parent=1 // pred_check_branch
      %89 = sbr.rel (%p87) target = $region47
    $region46: #{tpu_custom_call.1} parent=1 // pred_region
      %s90 = sshll.u32 1, 1
      %s91 = ssub.s32 %s90, 1
      loop: start=0, step=1, limit=1
      $region48: #{tpu_custom_call.1} parent=46 // loop_pre_header
        _
      $region49: #{tpu_custom_call.1} parent=46 // loop_header
        %s93 = sphi 0, %s97
        %p94 = scmp.ge.s32.totalorder %s93, 1
        %s98 = sphi %s79, %s79
        %s99 = sphi %s80, %s80
      $region50: #{tpu_custom_call.1} parent=46 // loop_header_branch
        %96 = sbr.rel (%p94) target = $region54
      $region51: #{tpu_custom_call.1} parent=46 // loop_body
        %v100 = vld [vmem:[%s98] sm:%s91]
        %101 = vst [vmem:[%s99] sm:%s91] %v100
      $region52: #{tpu_custom_call.1} parent=46 // loop_footer
        %s97 = sadd.s32 1, %s93
      $region53: #{tpu_custom_call.1} parent=46 // loop_footer_branch
        %92 = sbr.rel target = $region49
      $region54: #{tpu_custom_call.1} parent=46 // loop_exit
        _
    $region47: #{tpu_custom_call.1} parent=1 // pred_fallthru
      _
    // Predicated region
    $region66: #{tpu_custom_call.1} parent=1 // pred_check
      _
    $region67: #{tpu_custom_call.1} parent=1 // pred_check_branch
      %126 = sbr.rel (0) target = $region69
    $region68: #{tpu_custom_call.1} parent=1 // pred_region
      %127 = vsyncadd %s81, 16
    $region69: #{tpu_custom_call.1} parent=1 // pred_fallthru
      _
    %s128 = sadd.s32 %s20, 2
    %p129 = scmp.lt.s32.totalorder %s128, 1
    %s130 = scalar_select %p129, %s128, 1
    %s131 = smul.u32 %s130, 8
    %s132 = sld [smem:[#allocation5 + %s130]]
    %s133 = sadd.s32 %s131, %s132
    %s134 = scalar_lea.vmem %s1, %s133
    %s135 = scalar_lea.vmem [#allocation2], 2
    %s136 = scalar_lea.sflag [#allocation3], 2
    %p138 = scmp.lt.u32.totalorder 1, 8
    %p139 = pneg %p138
    // Predicated region
    $region70: #{tpu_custom_call.1} parent=1 // pred_check
      _
    $region71: #{tpu_custom_call.1} parent=1 // pred_check_branch
      %141 = sbr.rel (%p138) target = $region73
    $region72: #{tpu_custom_call.1} parent=1 // pred_region
      %s157 = sand.u32 1, 7
      %p158 = scmp.eq.s32.totalorder %s157, 0
      %p159 = pneg %p158
      // Predicated region
      $region85: #{tpu_custom_call.1} parent=72 // pred_check
        _
      $region86: #{tpu_custom_call.1} parent=72 // pred_check_branch
        %161 = sbr.rel (%p158) target = $region88
      $region87: #{tpu_custom_call.1} parent=72 // pred_region
        %s162 = sand.u32 1, 7
        %s163 = ssub.s32 1, %s162
        %s164 = scalar_lea.vmem %s134, %s163
        %s165 = ssub.s32 1, %s162
        %s166 = scalar_lea.vmem %s135, %s165 [#allocation2]
        %s167 = sshll.u32 1, %s162
        %s168 = ssub.s32 %s167, 1
        loop: start=0, step=1, limit=1
        $region89: #{tpu_custom_call.1} parent=87 // loop_pre_header
          _
        $region90: #{tpu_custom_call.1} parent=87 // loop_header
          %s170 = sphi 0, %s174
          %p171 = scmp.ge.s32.totalorder %s170, 1
          %s175 = sphi %s164, %s164
          %s176 = sphi %s166, %s166
        $region91: #{tpu_custom_call.1} parent=87 // loop_header_branch
          %173 = sbr.rel (%p171) target = $region95
        $region92: #{tpu_custom_call.1} parent=87 // loop_body
          %v177 = vld [vmem:[%s175] sm:%s168]
          %178 = vst [vmem:[%s176] sm:%s168] %v177
        $region93: #{tpu_custom_call.1} parent=87 // loop_footer
          %s174 = sadd.s32 1, %s170
        $region94: #{tpu_custom_call.1} parent=87 // loop_footer_branch
          %169 = sbr.rel target = $region90
        $region95: #{tpu_custom_call.1} parent=87 // loop_exit
          _
      $region88: #{tpu_custom_call.1} parent=72 // pred_fallthru
        _
    $region73: #{tpu_custom_call.1} parent=1 // pred_fallthru
      _
    // Predicated region
    $region74: #{tpu_custom_call.1} parent=1 // pred_check
      %p142 = pneg %p138
    $region75: #{tpu_custom_call.1} parent=1 // pred_check_branch
      %144 = sbr.rel (%p142) target = $region77
    $region76: #{tpu_custom_call.1} parent=1 // pred_region
      %s145 = sshll.u32 1, 1
      %s146 = ssub.s32 %s145, 1
      loop: start=0, step=1, limit=1
      $region78: #{tpu_custom_call.1} parent=76 // loop_pre_header
        _
      $region79: #{tpu_custom_call.1} parent=76 // loop_header
        %s148 = sphi 0, %s152
        %p149 = scmp.ge.s32.totalorder %s148, 1
        %s153 = sphi %s134, %s134
        %s154 = sphi %s135, %s135
      $region80: #{tpu_custom_call.1} parent=76 // loop_header_branch
        %151 = sbr.rel (%p149) target = $region84
      $region81: #{tpu_custom_call.1} parent=76 // loop_body
        %v155 = vld [vmem:[%s153] sm:%s146]
        %156 = vst [vmem:[%s154] sm:%s146] %v155
      $region82: #{tpu_custom_call.1} parent=76 // loop_footer
        %s152 = sadd.s32 1, %s148
      $region83: #{tpu_custom_call.1} parent=76 // loop_footer_branch
        %147 = sbr.rel target = $region79
      $region84: #{tpu_custom_call.1} parent=76 // loop_exit
        _
    $region77: #{tpu_custom_call.1} parent=1 // pred_fallthru
      _
    // Predicated region
    $region96: #{tpu_custom_call.1} parent=1 // pred_check
      _
    $region97: #{tpu_custom_call.1} parent=1 // pred_check_branch
      %181 = sbr.rel (0) target = $region99
    $region98: #{tpu_custom_call.1} parent=1 // pred_region
      %182 = vsyncadd %s136, 16
    $region99: #{tpu_custom_call.1} parent=1 // pred_fallthru
      _
    %s183 = sadd.s32 %s20, 3
    %p184 = scmp.lt.s32.totalorder %s183, 1
    %s185 = scalar_select %p184, %s183, 1
    %s186 = smul.u32 %s185, 8
    %s187 = sld [smem:[#allocation5 + %s185]]
    %s188 = sadd.s32 %s186, %s187
    %s189 = scalar_lea.vmem %s1, %s188
    %s190 = scalar_lea.vmem [#allocation2], 3
    %s191 = scalar_lea.sflag [#allocation3], 3
    %p193 = scmp.lt.u32.totalorder 1, 8
    %p194 = pneg %p193
    // Predicated region
    $region100: #{tpu_custom_call.1} parent=1 // pred_check
      _
    $region101: #{tpu_custom_call.1} parent=1 // pred_check_branch
      %196 = sbr.rel (%p193) target = $region103
    $region102: #{tpu_custom_call.1} parent=1 // pred_region
      %s212 = sand.u32 1, 7
      %p213 = scmp.eq.s32.totalorder %s212, 0
      %p214 = pneg %p213
      // Predicated region
      $region115: #{tpu_custom_call.1} parent=102 // pred_check
        _
      $region116: #{tpu_custom_call.1} parent=102 // pred_check_branch
        %216 = sbr.rel (%p213) target = $region118
      $region117: #{tpu_custom_call.1} parent=102 // pred_region
        %s217 = sand.u32 1, 7
        %s218 = ssub.s32 1, %s217
        %s219 = scalar_lea.vmem %s189, %s218
        %s220 = ssub.s32 1, %s217
        %s221 = scalar_lea.vmem %s190, %s220 [#allocation2]
        %s222 = sshll.u32 1, %s217
        %s223 = ssub.s32 %s222, 1
        loop: start=0, step=1, limit=1
        $region119: #{tpu_custom_call.1} parent=117 // loop_pre_header
          _
        $region120: #{tpu_custom_call.1} parent=117 // loop_header
          %s225 = sphi 0, %s229
          %p226 = scmp.ge.s32.totalorder %s225, 1
          %s230 = sphi %s219, %s219
          %s231 = sphi %s221, %s221
        $region121: #{tpu_custom_call.1} parent=117 // loop_header_branch
          %228 = sbr.rel (%p226) target = $region125
        $region122: #{tpu_custom_call.1} parent=117 // loop_body
          %v232 = vld [vmem:[%s230] sm:%s223]
          %233 = vst [vmem:[%s231] sm:%s223] %v232
        $region123: #{tpu_custom_call.1} parent=117 // loop_footer
          %s229 = sadd.s32 1, %s225
        $region124: #{tpu_custom_call.1} parent=117 // loop_footer_branch
          %224 = sbr.rel target = $region120
        $region125: #{tpu_custom_call.1} parent=117 // loop_exit
          _
      $region118: #{tpu_custom_call.1} parent=102 // pred_fallthru
        _
    $region103: #{tpu_custom_call.1} parent=1 // pred_fallthru
      _
    // Predicated region
    $region104: #{tpu_custom_call.1} parent=1 // pred_check
      %p197 = pneg %p193
    $region105: #{tpu_custom_call.1} parent=1 // pred_check_branch
      %199 = sbr.rel (%p197) target = $region107
    $region106: #{tpu_custom_call.1} parent=1 // pred_region
      %s200 = sshll.u32 1, 1
      %s201 = ssub.s32 %s200, 1
      loop: start=0, step=1, limit=1
      $region108: #{tpu_custom_call.1} parent=106 // loop_pre_header
        _
      $region109: #{tpu_custom_call.1} parent=106 // loop_header
        %s203 = sphi 0, %s207
        %p204 = scmp.ge.s32.totalorder %s203, 1
        %s208 = sphi %s189, %s189
        %s209 = sphi %s190, %s190
      $region110: #{tpu_custom_call.1} parent=106 // loop_header_branch
        %206 = sbr.rel (%p204) target = $region114
      $region111: #{tpu_custom_call.1} parent=106 // loop_body
        %v210 = vld [vmem:[%s208] sm:%s201]
        %211 = vst [vmem:[%s209] sm:%s201] %v210
      $region112: #{tpu_custom_call.1} parent=106 // loop_footer
        %s207 = sadd.s32 1, %s203
      $region113: #{tpu_custom_call.1} parent=106 // loop_footer_branch
        %202 = sbr.rel target = $region109
      $region114: #{tpu_custom_call.1} parent=106 // loop_exit
        _
    $region107: #{tpu_custom_call.1} parent=1 // pred_fallthru
      _
    // Predicated region
    $region126: #{tpu_custom_call.1} parent=1 // pred_check
      _
    $region127: #{tpu_custom_call.1} parent=1 // pred_check_branch
      %236 = sbr.rel (0) target = $region129
    $region128: #{tpu_custom_call.1} parent=1 // pred_region
      %237 = vsyncadd %s191, 16
    $region129: #{tpu_custom_call.1} parent=1 // pred_fallthru
      _
    %s238 = sadd.s32 %s20, 4
    %p239 = scmp.lt.s32.totalorder %s238, 1
    %s240 = scalar_select %p239, %s238, 1
    %s241 = smul.u32 %s240, 8
    %s242 = sld [smem:[#allocation5 + %s240]]
    %s243 = sadd.s32 %s241, %s242
    %s244 = scalar_lea.vmem %s1, %s243
    %s245 = scalar_lea.vmem [#allocation2], 4
    %s246 = scalar_lea.sflag [#allocation3], 4
    %p248 = scmp.lt.u32.totalorder 1, 8
    %p249 = pneg %p248
    // Predicated region
    $region130: #{tpu_custom_call.1} parent=1 // pred_check
      _
    $region131: #{tpu_custom_call.1} parent=1 // pred_check_branch
      %251 = sbr.rel (%p248) target = $region133
    $region132: #{tpu_custom_call.1} parent=1 // pred_region
      %s267 = sand.u32 1, 7
      %p268 = scmp.eq.s32.totalorder %s267, 0
      %p269 = pneg %p268
      // Predicated region
      $region145: #{tpu_custom_call.1} parent=132 // pred_check
        _
      $region146: #{tpu_custom_call.1} parent=132 // pred_check_branch
        %271 = sbr.rel (%p268) target = $region148
      $region147: #{tpu_custom_call.1} parent=132 // pred_region
        %s272 = sand.u32 1, 7
        %s273 = ssub.s32 1, %s272
        %s274 = scalar_lea.vmem %s244, %s273
        %s275 = ssub.s32 1, %s272
        %s276 = scalar_lea.vmem %s245, %s275 [#allocation2]
        %s277 = sshll.u32 1, %s272
        %s278 = ssub.s32 %s277, 1
        loop: start=0, step=1, limit=1
        $region149: #{tpu_custom_call.1} parent=147 // loop_pre_header
          _
        $region150: #{tpu_custom_call.1} parent=147 // loop_header
          %s280 = sphi 0, %s284
          %p281 = scmp.ge.s32.totalorder %s280, 1
          %s285 = sphi %s274, %s274
          %s286 = sphi %s276, %s276
        $region151: #{tpu_custom_call.1} parent=147 // loop_header_branch
          %283 = sbr.rel (%p281) target = $region155
        $region152: #{tpu_custom_call.1} parent=147 // loop_body
          %v287 = vld [vmem:[%s285] sm:%s278]
          %288 = vst [vmem:[%s286] sm:%s278] %v287
        $region153: #{tpu_custom_call.1} parent=147 // loop_footer
          %s284 = sadd.s32 1, %s280
        $region154: #{tpu_custom_call.1} parent=147 // loop_footer_branch
          %279 = sbr.rel target = $region150
        $region155: #{tpu_custom_call.1} parent=147 // loop_exit
          _
      $region148: #{tpu_custom_call.1} parent=132 // pred_fallthru
        _
    $region133: #{tpu_custom_call.1} parent=1 // pred_fallthru
      _
    // Predicated region
    $region134: #{tpu_custom_call.1} parent=1 // pred_check
      %p252 = pneg %p248
    $region135: #{tpu_custom_call.1} parent=1 // pred_check_branch
      %254 = sbr.rel (%p252) target = $region137
    $region136: #{tpu_custom_call.1} parent=1 // pred_region
      %s255 = sshll.u32 1, 1
      %s256 = ssub.s32 %s255, 1
      loop: start=0, step=1, limit=1
      $region138: #{tpu_custom_call.1} parent=136 // loop_pre_header
        _
      $region139: #{tpu_custom_call.1} parent=136 // loop_header
        %s258 = sphi 0, %s262
        %p259 = scmp.ge.s32.totalorder %s258, 1
        %s263 = sphi %s244, %s244
        %s264 = sphi %s245, %s245
      $region140: #{tpu_custom_call.1} parent=136 // loop_header_branch
        %261 = sbr.rel (%p259) target = $region144
      $region141: #{tpu_custom_call.1} parent=136 // loop_body
        %v265 = vld [vmem:[%s263] sm:%s256]
        %266 = vst [vmem:[%s264] sm:%s256] %v265
      $region142: #{tpu_custom_call.1} parent=136 // loop_footer
        %s262 = sadd.s32 1, %s258
      $region143: #{tpu_custom_call.1} parent=136 // loop_footer_branch
        %257 = sbr.rel target = $region139
      $region144: #{tpu_custom_call.1} parent=136 // loop_exit
        _
    $region137: #{tpu_custom_call.1} parent=1 // pred_fallthru
      _
    // Predicated region
    $region156: #{tpu_custom_call.1} parent=1 // pred_check
      _
    $region157: #{tpu_custom_call.1} parent=1 // pred_check_branch
      %291 = sbr.rel (0) target = $region159
    $region158: #{tpu_custom_call.1} parent=1 // pred_region
      %292 = vsyncadd %s246, 16
    $region159: #{tpu_custom_call.1} parent=1 // pred_fallthru
      _
    %s293 = sadd.s32 %s20, 5
    %p294 = scmp.lt.s32.totalorder %s293, 1
    %s295 = scalar_select %p294, %s293, 1
    %s296 = smul.u32 %s295, 8
    %s297 = sld [smem:[#allocation5 + %s295]]
    %s298 = sadd.s32 %s296, %s297
    %s299 = scalar_lea.vmem %s1, %s298
    %s300 = scalar_lea.vmem [#allocation2], 5
    %s301 = scalar_lea.sflag [#allocation3], 5
    %p303 = scmp.lt.u32.totalorder 1, 8
    %p304 = pneg %p303
    // Predicated region
    $region160: #{tpu_custom_call.1} parent=1 // pred_check
      _
    $region161: #{tpu_custom_call.1} parent=1 // pred_check_branch
      %306 = sbr.rel (%p303) target = $region163
    $region162: #{tpu_custom_call.1} parent=1 // pred_region
      %s322 = sand.u32 1, 7
      %p323 = scmp.eq.s32.totalorder %s322, 0
      %p324 = pneg %p323
      // Predicated region
      $region175: #{tpu_custom_call.1} parent=162 // pred_check
        _
      $region176: #{tpu_custom_call.1} parent=162 // pred_check_branch
        %326 = sbr.rel (%p323) target = $region178
      $region177: #{tpu_custom_call.1} parent=162 // pred_region
        %s327 = sand.u32 1, 7
        %s328 = ssub.s32 1, %s327
        %s329 = scalar_lea.vmem %s299, %s328
        %s330 = ssub.s32 1, %s327
        %s331 = scalar_lea.vmem %s300, %s330 [#allocation2]
        %s332 = sshll.u32 1, %s327
        %s333 = ssub.s32 %s332, 1
        loop: start=0, step=1, limit=1
        $region179: #{tpu_custom_call.1} parent=177 // loop_pre_header
          _
        $region180: #{tpu_custom_call.1} parent=177 // loop_header
          %s335 = sphi 0, %s339
          %p336 = scmp.ge.s32.totalorder %s335, 1
          %s340 = sphi %s329, %s329
          %s341 = sphi %s331, %s331
        $region181: #{tpu_custom_call.1} parent=177 // loop_header_branch
          %338 = sbr.rel (%p336) target = $region185
        $region182: #{tpu_custom_call.1} parent=177 // loop_body
          %v342 = vld [vmem:[%s340] sm:%s333]
          %343 = vst [vmem:[%s341] sm:%s333] %v342
        $region183: #{tpu_custom_call.1} parent=177 // loop_footer
          %s339 = sadd.s32 1, %s335
        $region184: #{tpu_custom_call.1} parent=177 // loop_footer_branch
          %334 = sbr.rel target = $region180
        $region185: #{tpu_custom_call.1} parent=177 // loop_exit
          _
      $region178: #{tpu_custom_call.1} parent=162 // pred_fallthru
        _
    $region163: #{tpu_custom_call.1} parent=1 // pred_fallthru
      _
    // Predicated region
    $region164: #{tpu_custom_call.1} parent=1 // pred_check
      %p307 = pneg %p303
    $region165: #{tpu_custom_call.1} parent=1 // pred_check_branch
      %309 = sbr.rel (%p307) target = $region167
    $region166: #{tpu_custom_call.1} parent=1 // pred_region
      %s310 = sshll.u32 1, 1
      %s311 = ssub.s32 %s310, 1
      loop: start=0, step=1, limit=1
      $region168: #{tpu_custom_call.1} parent=166 // loop_pre_header
        _
      $region169: #{tpu_custom_call.1} parent=166 // loop_header
        %s313 = sphi 0, %s317
        %p314 = scmp.ge.s32.totalorder %s313, 1
        %s318 = sphi %s299, %s299
        %s319 = sphi %s300, %s300
      $region170: #{tpu_custom_call.1} parent=166 // loop_header_branch
        %316 = sbr.rel (%p314) target = $region174
      $region171: #{tpu_custom_call.1} parent=166 // loop_body
        %v320 = vld [vmem:[%s318] sm:%s311]
        %321 = vst [vmem:[%s319] sm:%s311] %v320
      $region172: #{tpu_custom_call.1} parent=166 // loop_footer
        %s317 = sadd.s32 1, %s313
      $region173: #{tpu_custom_call.1} parent=166 // loop_footer_branch
        %312 = sbr.rel target = $region169
      $region174: #{tpu_custom_call.1} parent=166 // loop_exit
        _
    $region167: #{tpu_custom_call.1} parent=1 // pred_fallthru
      _
    // Predicated region
    $region186: #{tpu_custom_call.1} parent=1 // pred_check
      _
    $region187: #{tpu_custom_call.1} parent=1 // pred_check_branch
      %346 = sbr.rel (0) target = $region189
    $region188: #{tpu_custom_call.1} parent=1 // pred_region
      %347 = vsyncadd %s301, 16
    $region189: #{tpu_custom_call.1} parent=1 // pred_fallthru
      _
    %s348 = sadd.s32 %s20, 6
    %p349 = scmp.lt.s32.totalorder %s348, 1
    %s350 = scalar_select %p349, %s348, 1
    %s351 = smul.u32 %s350, 8
    %s352 = sld [smem:[#allocation5 + %s350]]
    %s353 = sadd.s32 %s351, %s352
    %s354 = scalar_lea.vmem %s1, %s353
    %s355 = scalar_lea.vmem [#allocation2], 6
    %s356 = scalar_lea.sflag [#allocation3], 6
    %p358 = scmp.lt.u32.totalorder 1, 8
    %p359 = pneg %p358
    // Predicated region
    $region190: #{tpu_custom_call.1} parent=1 // pred_check
      _
    $region191: #{tpu_custom_call.1} parent=1 // pred_check_branch
      %361 = sbr.rel (%p358) target = $region193
    $region192: #{tpu_custom_call.1} parent=1 // pred_region
      %s377 = sand.u32 1, 7
      %p378 = scmp.eq.s32.totalorder %s377, 0
      %p379 = pneg %p378
      // Predicated region
      $region205: #{tpu_custom_call.1} parent=192 // pred_check
        _
      $region206: #{tpu_custom_call.1} parent=192 // pred_check_branch
        %381 = sbr.rel (%p378) target = $region208
      $region207: #{tpu_custom_call.1} parent=192 // pred_region
        %s382 = sand.u32 1, 7
        %s383 = ssub.s32 1, %s382
        %s384 = scalar_lea.vmem %s354, %s383
        %s385 = ssub.s32 1, %s382
        %s386 = scalar_lea.vmem %s355, %s385 [#allocation2]
        %s387 = sshll.u32 1, %s382
        %s388 = ssub.s32 %s387, 1
        loop: start=0, step=1, limit=1
        $region209: #{tpu_custom_call.1} parent=207 // loop_pre_header
          _
        $region210: #{tpu_custom_call.1} parent=207 // loop_header
          %s390 = sphi 0, %s394
          %p391 = scmp.ge.s32.totalorder %s390, 1
          %s395 = sphi %s384, %s384
          %s396 = sphi %s386, %s386
        $region211: #{tpu_custom_call.1} parent=207 // loop_header_branch
          %393 = sbr.rel (%p391) target = $region215
        $region212: #{tpu_custom_call.1} parent=207 // loop_body
          %v397 = vld [vmem:[%s395] sm:%s388]
          %398 = vst [vmem:[%s396] sm:%s388] %v397
        $region213: #{tpu_custom_call.1} parent=207 // loop_footer
          %s394 = sadd.s32 1, %s390
        $region214: #{tpu_custom_call.1} parent=207 // loop_footer_branch
          %389 = sbr.rel target = $region210
        $region215: #{tpu_custom_call.1} parent=207 // loop_exit
          _
      $region208: #{tpu_custom_call.1} parent=192 // pred_fallthru
        _
    $region193: #{tpu_custom_call.1} parent=1 // pred_fallthru
      _
    // Predicated region
    $region194: #{tpu_custom_call.1} parent=1 // pred_check
      %p362 = pneg %p358
    $region195: #{tpu_custom_call.1} parent=1 // pred_check_branch
      %364 = sbr.rel (%p362) target = $region197
    $region196: #{tpu_custom_call.1} parent=1 // pred_region
      %s365 = sshll.u32 1, 1
      %s366 = ssub.s32 %s365, 1
      loop: start=0, step=1, limit=1
      $region198: #{tpu_custom_call.1} parent=196 // loop_pre_header
        _
      $region199: #{tpu_custom_call.1} parent=196 // loop_header
        %s368 = sphi 0, %s372
        %p369 = scmp.ge.s32.totalorder %s368, 1
        %s373 = sphi %s354, %s354
        %s374 = sphi %s355, %s355
      $region200: #{tpu_custom_call.1} parent=196 // loop_header_branch
        %371 = sbr.rel (%p369) target = $region204
      $region201: #{tpu_custom_call.1} parent=196 // loop_body
        %v375 = vld [vmem:[%s373] sm:%s366]
        %376 = vst [vmem:[%s374] sm:%s366] %v375
      $region202: #{tpu_custom_call.1} parent=196 // loop_footer
        %s372 = sadd.s32 1, %s368
      $region203: #{tpu_custom_call.1} parent=196 // loop_footer_branch
        %367 = sbr.rel target = $region199
      $region204: #{tpu_custom_call.1} parent=196 // loop_exit
        _
    $region197: #{tpu_custom_call.1} parent=1 // pred_fallthru
      _
    // Predicated region
    $region216: #{tpu_custom_call.1} parent=1 // pred_check
      _
    $region217: #{tpu_custom_call.1} parent=1 // pred_check_branch
      %401 = sbr.rel (0) target = $region219
    $region218: #{tpu_custom_call.1} parent=1 // pred_region
      %402 = vsyncadd %s356, 16
    $region219: #{tpu_custom_call.1} parent=1 // pred_fallthru
      _
    %s403 = sadd.s32 %s20, 7
    %p404 = scmp.lt.s32.totalorder %s403, 1
    %s405 = scalar_select %p404, %s403, 1
    %s406 = smul.u32 %s405, 8
    %s407 = sld [smem:[#allocation5 + %s405]]
    %s408 = sadd.s32 %s406, %s407
    %s409 = scalar_lea.vmem %s1, %s408
    %s410 = scalar_lea.vmem [#allocation2], 7
    %s411 = scalar_lea.sflag [#allocation3], 7
    %p413 = scmp.lt.u32.totalorder 1, 8
    %p414 = pneg %p413
    // Predicated region
    $region220: #{tpu_custom_call.1} parent=1 // pred_check
      _
    $region221: #{tpu_custom_call.1} parent=1 // pred_check_branch
      %416 = sbr.rel (%p413) target = $region223
    $region222: #{tpu_custom_call.1} parent=1 // pred_region
      %s432 = sand.u32 1, 7
      %p433 = scmp.eq.s32.totalorder %s432, 0
      %p434 = pneg %p433
      // Predicated region
      $region235: #{tpu_custom_call.1} parent=222 // pred_check
        _
      $region236: #{tpu_custom_call.1} parent=222 // pred_check_branch
        %436 = sbr.rel (%p433) target = $region238
      $region237: #{tpu_custom_call.1} parent=222 // pred_region
        %s437 = sand.u32 1, 7
        %s438 = ssub.s32 1, %s437
        %s439 = scalar_lea.vmem %s409, %s438
        %s440 = ssub.s32 1, %s437
        %s441 = scalar_lea.vmem %s410, %s440 [#allocation2]
        %s442 = sshll.u32 1, %s437
        %s443 = ssub.s32 %s442, 1
        loop: start=0, step=1, limit=1
        $region239: #{tpu_custom_call.1} parent=237 // loop_pre_header
          _
        $region240: #{tpu_custom_call.1} parent=237 // loop_header
          %s445 = sphi 0, %s449
          %p446 = scmp.ge.s32.totalorder %s445, 1
          %s450 = sphi %s439, %s439
          %s451 = sphi %s441, %s441
        $region241: #{tpu_custom_call.1} parent=237 // loop_header_branch
          %448 = sbr.rel (%p446) target = $region245
        $region242: #{tpu_custom_call.1} parent=237 // loop_body
          %v452 = vld [vmem:[%s450] sm:%s443]
          %453 = vst [vmem:[%s451] sm:%s443] %v452
        $region243: #{tpu_custom_call.1} parent=237 // loop_footer
          %s449 = sadd.s32 1, %s445
        $region244: #{tpu_custom_call.1} parent=237 // loop_footer_branch
          %444 = sbr.rel target = $region240
        $region245: #{tpu_custom_call.1} parent=237 // loop_exit
          _
      $region238: #{tpu_custom_call.1} parent=222 // pred_fallthru
        _
    $region223: #{tpu_custom_call.1} parent=1 // pred_fallthru
      _
    // Predicated region
    $region224: #{tpu_custom_call.1} parent=1 // pred_check
      %p417 = pneg %p413
    $region225: #{tpu_custom_call.1} parent=1 // pred_check_branch
      %419 = sbr.rel (%p417) target = $region227
    $region226: #{tpu_custom_call.1} parent=1 // pred_region
      %s420 = sshll.u32 1, 1
      %s421 = ssub.s32 %s420, 1
      loop: start=0, step=1, limit=1
      $region228: #{tpu_custom_call.1} parent=226 // loop_pre_header
        _
      $region229: #{tpu_custom_call.1} parent=226 // loop_header
        %s423 = sphi 0, %s427
        %p424 = scmp.ge.s32.totalorder %s423, 1
        %s428 = sphi %s409, %s409
        %s429 = sphi %s410, %s410
      $region230: #{tpu_custom_call.1} parent=226 // loop_header_branch
        %426 = sbr.rel (%p424) target = $region234
      $region231: #{tpu_custom_call.1} parent=226 // loop_body
        %v430 = vld [vmem:[%s428] sm:%s421]
        %431 = vst [vmem:[%s429] sm:%s421] %v430
      $region232: #{tpu_custom_call.1} parent=226 // loop_footer
        %s427 = sadd.s32 1, %s423
      $region233: #{tpu_custom_call.1} parent=226 // loop_footer_branch
        %422 = sbr.rel target = $region229
      $region234: #{tpu_custom_call.1} parent=226 // loop_exit
        _
    $region227: #{tpu_custom_call.1} parent=1 // pred_fallthru
      _
    // Predicated region
    $region246: #{tpu_custom_call.1} parent=1 // pred_check
      _
    $region247: #{tpu_custom_call.1} parent=1 // pred_check_branch
      %456 = sbr.rel (0) target = $region249
    $region248: #{tpu_custom_call.1} parent=1 // pred_region
      %457 = vsyncadd %s411, 16
    $region249: #{tpu_custom_call.1} parent=1 // pred_fallthru
      _
    %s458 = smul.u32 1, 1
    %s459 = sshll.u32 %s458, 4
    %460 = dma.done [#allocation3], %s459
    %s461 = sshll.u32 %s458, 4
    %462 = dma.done %s81, %s461
    %s463 = sshll.u32 %s458, 4
    %464 = dma.done %s136, %s463
    %s465 = sshll.u32 %s458, 4
    %466 = dma.done %s191, %s465
    %s467 = sshll.u32 %s458, 4
    %468 = dma.done %s246, %s467
    %s469 = sshll.u32 %s458, 4
    %470 = dma.done %s301, %s469
    %s471 = sshll.u32 %s458, 4
    %472 = dma.done %s356, %s471
    %s473 = sshll.u32 %s458, 4
    %474 = dma.done %s411, %s473
    %v475 = vld [vmem:[#allocation2] sm:$0xff]
    %v476 = vld [vmem:[%s2] sm:$0xff]
    %v477 = vld [vmem:[%s2 + $0x8] sm:$0xff]
    %v478 = vld [vmem:[%s2 + $0x10] sm:$0xff]
    %v479 = vld [vmem:[%s2 + $0x18] sm:$0xff]
    %v480 = vld [vmem:[%s3] sm:$0x1]
    %v482 = vlaneseq
    %v483 = vshrl.u32 %v482, 7
    %v484 = vsub.s32 0, %v483
    %v485 = vrot.slane %v480, %v484
    %vm487 = vcmask 261120
    %v489 = vsel %vm487, %v475, 0
    %491 = vmatprep.subr.mxu0 0.0
    %492 = vmatpush1.msra.mxu0 0.0
    %493 = vmatprep.subr.mxu0 0.0
    %494 = vmatpush1.msra.mxu0 0.0
    %495 = vmatprep.subr.mxu0 0.0
    %496 = vmatpush1.msra.mxu0 0.0
    %497 = vmatprep.subr.mxu0 0.0
    %498 = vmatpush1.msra.mxu0 0.0
    %499 = vmatprep.subr.mxu0 0.0
    %500 = vmatpush1.msra.mxu0 0.0
    %501 = vmatprep.subr.mxu0 0.0
    %502 = vmatpush1.msra.mxu0 0.0
    %503 = vmatprep.subr.mxu0 0.0
    %504 = vmatpush1.msra.mxu0 0.0
    %505 = vmatprep.subr.mxu0 0.0
    %506 = vmatpush1.msra.mxu0 0.0
    %507 = vmatprep.subr.mxu0 0.0
    %508 = vmatpush1.msra.mxu0 0.0
    %509 = vmatprep.subr.mxu0 0.0
    %510 = vmatpush1.msra.mxu0 0.0
    %511 = vmatprep.subr.mxu0 0.0
    %512 = vmatpush1.msra.mxu0 0.0
    %513 = vmatprep.subr.mxu0 0.0
    %514 = vmatpush1.msra.mxu0 0.0
    %515 = vmatprep.subr.mxu0 0.0
    %516 = vmatpush1.msra.mxu0 %v479
    %517 = vmatprep.subr.mxu0 0.0
    %518 = vmatpush1.msra.mxu0 %v478
    %519 = vmatprep.subr.mxu0 0.0
    %520 = vmatpush1.msra.mxu0 %v477
    %521 = vmatprep.subr.mxu0 0.0
    %522 = vmatpush1.msra.mxu0 %v476
    %523 = vmatprep.subr.mxu0 0.0
    %524 = vmatpush2.msra.mxu0 0.0
    %525 = vmatprep.subr.mxu0 0.0
    %526 = vmatpush2.msra.mxu0 0.0
    %527 = vmatprep.subr.mxu0 0.0
    %528 = vmatpush2.msra.mxu0 0.0
    %529 = vmatprep.subr.mxu0 0.0
    %530 = vmatpush2.msra.mxu0 0.0
    %531 = vmatprep.subr.mxu0 0.0
    %532 = vmatpush2.msra.mxu0 0.0
    %533 = vmatprep.subr.mxu0 0.0
    %534 = vmatpush2.msra.mxu0 0.0
    %535 = vmatprep.subr.mxu0 0.0
    %536 = vmatpush2.msra.mxu0 0.0
    %537 = vmatprep.subr.mxu0 0.0
    %538 = vmatpush2.msra.mxu0 0.0
    %539 = vmatprep.subr.mxu0 0.0
    %540 = vmatpush2.msra.mxu0 0.0
    %541 = vmatprep.subr.mxu0 0.0
    %542 = vmatpush2.msra.mxu0 0.0
    %543 = vmatprep.subr.mxu0 0.0
    %544 = vmatpush2.msra.mxu0 0.0
    %545 = vmatprep.subr.mxu0 0.0
    %546 = vmatpush2.msra.mxu0 0.0
    %547 = vmatprep.subr.mxu0 0.0
    %548 = vmatpush2.msra.mxu0 0.0
    %549 = vmatprep.subr.mxu0 0.0
    %550 = vmatpush2.msra.mxu0 0.0
    %551 = vmatprep.subr.mxu0 0.0
    %552 = vmatpush2.msra.mxu0 0.0
    %553 = vmatprep.subr.mxu0 0.0
    %554 = vmatpush2.msra.mxu0 0.0
    %555 = vmatprep.mubr.f32.mxu0 0.0
    %556 = vmatmul.mubr.f32.gmra.mxu0 %v489
    %v557 = vpop.f32.mrf.mxu0
    %v558 = vadd.f32 %v485, %v557
    %v559 = vpop.f32.mrf.mxu0
    %560 = vdwg.mxu0
    %vm561 = vcmask 64512
    %562 = vst.msk [vmem:[#allocation6] sm:$0xff] %vm561, %v558
    // Predicated region
    $region250: #{tpu_custom_call.1} parent=1 // pred_check
      _
    $region251: #{tpu_custom_call.1} parent=1 // pred_check_branch
      %564 = sbr.rel (0) target = $region253
    $region252: #{tpu_custom_call.1} parent=1 // pred_region
      %s566 = ssub.s32 128, 128
      %567 = vsyncadd [#allocation7], %s566
      %s569 = sshll.u32 [#allocation6], 4
      %s570 = int_to_ptr.vmem [resolvable:$true] %s569
      %572 = dma.vmem_to_hbm [thread:$0]  %s570, 128, %s4, [#allocation7]
    $region253: #{tpu_custom_call.1} parent=1 // pred_fallthru
      _
    // Predicated region
    $region254: #{tpu_custom_call.1} parent=1 // pred_check
      _
    $region255: #{tpu_custom_call.1} parent=1 // pred_check_branch
      %574 = sbr.rel (0) target = $region257
    $region256: #{tpu_custom_call.1} parent=1 // pred_region
      %575 = dma.done [#allocation7], 128
    $region257: #{tpu_custom_call.1} parent=1 // pred_fallthru
      _
    %576 = vsyncpa [#allocation7], 1
  %577 = vsyncmov [#allocation3]
  %s578 = vpop.sfrf %577
  %p579 = scmp.eq.s32.totalorder %s578, 0
  %p580 = pneg %p579
  %582 = shalt.err (%p580)
  %s583 = scalar_lea.sflag [#allocation3], 1
  %584 = vsyncmov %s583
  %s585 = vpop.sfrf %584
  %p586 = scmp.eq.s32.totalorder %s585, 0
  %p587 = pneg %p586
  %589 = shalt.err (%p587)
  %s590 = scalar_lea.sflag [#allocation3], 2
  %591 = vsyncmov %s590
  %s592 = vpop.sfrf %591
  %p593 = scmp.eq.s32.totalorder %s592, 0
  %p594 = pneg %p593
  %596 = shalt.err (%p594)
  %s597 = scalar_lea.sflag [#allocation3], 3
  %598 = vsyncmov %s597
  %s599 = vpop.sfrf %598
  %p600 = scmp.eq.s32.totalorder %s599, 0
  %p601 = pneg %p600
  %603 = shalt.err (%p601)
  %s604 = scalar_lea.sflag [#allocation3], 4
  %605 = vsyncmov %s604
  %s606 = vpop.sfrf %605
  %p607 = scmp.eq.s32.totalorder %s606, 0
  %p608 = pneg %p607
  %610 = shalt.err (%p608)
  %s611 = scalar_lea.sflag [#allocation3], 5
  %612 = vsyncmov %s611
  %s613 = vpop.sfrf %612
  %p614 = scmp.eq.s32.totalorder %s613, 0
  %p615 = pneg %p614
  %617 = shalt.err (%p615)
  %s618 = scalar_lea.sflag [#allocation3], 6
  %619 = vsyncmov %s618
  %s620 = vpop.sfrf %619
  %p621 = scmp.eq.s32.totalorder %s620, 0
  %p622 = pneg %p621
  %624 = shalt.err (%p622)
  %s625 = scalar_lea.sflag [#allocation3], 7
  %626 = vsyncmov %s625
  %s627 = vpop.sfrf %626
  %p628 = scmp.eq.s32.totalorder %s627, 0
  %p629 = pneg %p628
  %631 = shalt.err (%p629)

</llo_original>
